<compile_context>
chip_gen: v7x
topology: tpu7x:2x2x1
jax: 0.10.0
libtpu: 0.0.40
codegen_flags: <defaults>
</compile_context>

<pallas_src>
from typing import List, Optional

import numpy as np
import jax
import jax.numpy as jnp
from jax import lax
from jax.experimental import pallas as pl
from jax.experimental.pallas import tpu as pltpu


# ------------------------------ helpers ----------------------------------- #

_DEFAULT_VMEM_BUDGET = 10 * 1024 * 1024   # conservative: fits v5e's 16 MiB scoped default
_ONEHOT_MAX_L_OVER_S = 8                  # one-hot scan only when L <= 8 * S_pad


def _round_up(x: int, m: int) -> int:
    return ((x + m - 1) // m) * m


def _sublane_multiple(dtype) -> int:
    """Native sublane multiple for a dtype (8 f32 / 16 bf16 / 32 int8)."""
    return max(8, 32 // np.dtype(dtype).itemsize)


def _seed_from_key(key) -> int:
    """Derive a host-side integer seed from a JAX PRNG key (old or new style).

    Note: distinct keys can in principle collide (we only need statistical
    equivalence with torch's CPU RNG, not stream reproduction)."""
    if jnp.issubdtype(key.dtype, jax.dtypes.prng_key):
        kd = jax.random.key_data(key)
    else:
        kd = key
    kd = np.asarray(kd).astype(np.uint64).ravel()
    h = 0xCBF29CE484222325
    for w in kd:  # FNV-1a style mix to reduce collisions vs. a plain sum
        h = ((h ^ int(w)) * 0x100000001B3) & 0xFFFFFFFFFFFFFFFF
    return h & 0x7FFFFFFF


# ------------------- indexed-gather path (S_pad << L) ---------------------- #

def _indexed_gather_kernel(idx_ref, emb_ref, crd_ref, emb_out, crd_out):
    # idx_ref (SMEM) is only consumed by the index_maps.
    del idx_ref
    s = pl.program_id(0)
    emb_out[pl.ds(s, 1), :] = emb_ref[...].reshape(1, emb_out.shape[1])
    crd_out[pl.ds(s, 1), :] = crd_ref[...].reshape(1, crd_out.shape[1])


def _gather_indexed(emb, coords, idx_pad):
    """True row gather: only the selected rows are read from HBM."""
    L, D_e = emb.shape
    _, D_c = coords.shape
    S_pad = int(idx_pad.shape[0])

    grid_spec = pltpu.PrefetchScalarGridSpec(
        num_scalar_prefetch=1,                 # idx_pad lands in SMEM
        grid=(S_pad,),
        in_specs=[
            # Data-dependent row windows: one selected row per grid step.
            pl.BlockSpec((pl.Element(1), D_e), lambda s, idx: (idx[s], 0)),
            pl.BlockSpec((pl.Element(1), D_c), lambda s, idx: (idx[s], 0)),
        ],
        out_specs=(
            # Outputs stay resident in VMEM across the grid; each step writes
            # one row; single writeback at the end.
            pl.BlockSpec((S_pad, D_e), lambda s, idx: (0, 0)),
            pl.BlockSpec((S_pad, D_c), lambda s, idx: (0, 0)),
        ),
    )
    return pl.pallas_call(
        _indexed_gather_kernel,
        grid_spec=grid_spec,
        out_shape=(
            jax.ShapeDtypeStruct((S_pad, D_e), emb.dtype),
            jax.ShapeDtypeStruct((S_pad, D_c), coords.dtype),
        ),
        compiler_params=pltpu.CompilerParams(
            dimension_semantics=("arbitrary",)),   # resident outputs -> no core split
    )(idx_pad, emb, coords)


# ---------------- one-hot MXU fallback path (S_pad ~ L) -------------------- #

def _gather_onehot(emb, coords, idx_pad, vmem_budget_bytes):
    """Gather via a one-hot MXU matmul over the (possibly chunked) table."""
    L, D_e = emb.shape
    _, D_c = coords.shape
    S_pad = int(idx_pad.shape[0])
    esz = np.dtype(emb.dtype).itemsize
    csz = np.dtype(coords.dtype).itemsize
    same_dtype = emb.dtype == coords.dtype
    oh_sz = max(esz, csz) if same_dtype else esz + csz

    # VMEM-aware chunk sizing: double-buffered input chunks plus the
    # (S_pad, TL) one-hot and int32 iota temporaries per table row, plus
    # chunk-independent accumulators / double-buffered outputs.
    in_row_bytes = D_e * esz + D_c * csz
    per_row = 2 * in_row_bytes + S_pad * (oh_sz + 4)
    fixed = 2 * S_pad * (D_e + D_c) * 4 + 2 * S_pad * in_row_bytes
    avail = max(int(vmem_budget_bytes) - fixed, 8 * per_row)
    TL_max = max(8, (avail // per_row) // 8 * 8)

    if L <= TL_max:
        TL, num_chunks, ragged = L, 1, False
    else:
        TL = TL_max
        num_chunks = pl.cdiv(L, TL)
        ragged = (L % TL) != 0   # last chunk has garbage tail rows -> mask

    def kernel(idx_ref, emb_ref, crd_ref, emb_out, crd_out, *acc):
        l = pl.program_id(0)
        # one-hot[s, t] = (idx[s] == l*TL + t)
        local = idx_ref[...] - l * TL                                    # (S_pad, 1)
        onehot = local == lax.broadcasted_iota(jnp.int32, (S_pad, TL), 1)

        e_chunk = emb_ref[...]
        c_chunk = crd_ref[...]
        if ragged:
            # Mask rows past L with a select (NOT a multiply: 0 * NaN = NaN).
            rows = l * TL + lax.broadcasted_iota(jnp.int32, (TL, 1), 0)
            valid = rows < L
            e_chunk = jnp.where(valid, e_chunk, jnp.zeros_like(e_chunk))
            c_chunk = jnp.where(valid, c_chunk, jnp.zeros_like(c_chunk))

        if same_dtype:
            oh_e = oh_c = onehot.astype(e_chunk.dtype)    # single cast one-hot
        else:
            oh_e = onehot.astype(e_chunk.dtype)
            oh_c = onehot.astype(c_chunk.dtype)
        part_e = jnp.dot(oh_e, e_chunk, preferred_element_type=jnp.float32)
        part_c = jnp.dot(oh_c, c_chunk, preferred_element_type=jnp.float32)

        if num_chunks == 1:
            # Single chunk: no scratch, no zero pass, just assign.
            emb_out[...] = part_e.astype(emb_out.dtype)
            crd_out[...] = part_c.astype(crd_out.dtype)
        else:
            acc_e, acc_c = acc

            @pl.when(l == 0)
            def _():
                acc_e[...] = part_e
                acc_c[...] = part_c

            @pl.when(l > 0)
            def _():
                acc_e[...] += part_e
                acc_c[...] += part_c

            @pl.when(l == num_chunks - 1)
            def _():
                emb_out[...] = acc_e[...].astype(emb_out.dtype)
                crd_out[...] = acc_c[...].astype(crd_out.dtype)

    scratch = []
    if num_chunks > 1:
        scratch = [pltpu.VMEM((S_pad, D_e), jnp.float32),
                   pltpu.VMEM((S_pad, D_c), jnp.float32)]

    idx2d = idx_pad.reshape(S_pad, 1)
    return pl.pallas_call(
        kernel,
        out_shape=(
            jax.ShapeDtypeStruct((S_pad, D_e), emb.dtype),
            jax.ShapeDtypeStruct((S_pad, D_c), coords.dtype),
        ),
        grid=(num_chunks,),
        in_specs=[
            pl.BlockSpec((S_pad, 1), lambda l: (0, 0)),   # indices (whole)
            pl.BlockSpec((TL, D_e), lambda l: (l, 0)),    # emb L-chunk
            pl.BlockSpec((TL, D_c), lambda l: (l, 0)),    # coords L-chunk
        ],
        out_specs=(
            pl.BlockSpec((S_pad, D_e), lambda l: (0, 0)),  # resident output
            pl.BlockSpec((S_pad, D_c), lambda l: (0, 0)),  # resident output
        ),
        scratch_shapes=scratch,
        compiler_params=pltpu.CompilerParams(
            dimension_semantics=("arbitrary",)),           # L axis is a reduction
    )(idx2d, emb, coords)


# ------------------------------ dispatcher --------------------------------- #

def gather_rows_fused(emb: jax.Array, coords: jax.Array, idx_pad,
                      *, vmem_budget_bytes: int = _DEFAULT_VMEM_BUDGET):
    """Gather rows idx_pad from emb ([L, D_e]) and coords ([L, D_c]).

    idx_pad is a static-size, sublane-aligned index vector (padded entries
    point at row 0 and are sliced away by the caller).  Returns
    (emb_sel, coords_sel) of shapes (S_pad, D_e) and (S_pad, D_c).
    """
    L, D_e = emb.shape
    Lc, D_c = coords.shape
    assert L == Lc, "embeddings and coords must have the same number of rows"
    S_pad = int(idx_pad.shape[0])
    assert S_pad % 8 == 0
    idx_pad = jnp.asarray(idx_pad, dtype=jnp.int32)

    if L > _ONEHOT_MAX_L_OVER_S * S_pad:
        return _gather_indexed(emb, coords, idx_pad)       # S << L: row DMA gather
    return _gather_onehot(emb, coords, idx_pad, vmem_budget_bytes)


# --------------------------- Module equivalent ----------------------------- #

class NViewRandomMasking:
    def __init__(self,
                 masking_ratio_ranges: List[List[float]] = [[0.8, 1], [0.3, 0.7]],
                 max_num_tokens: Optional[List[int]] = None,
                 fixed_order: bool = False):
        self.n_views_ = len(masking_ratio_ranges)
        mrr = np.asarray(masking_ratio_ranges, dtype=np.float32)
        self.masking_range_ = np.diff(mrr, axis=1).squeeze(axis=1)
        self.masking_min_ = mrr[:, 0]
        if max_num_tokens:
            self.num_max_token_ = np.asarray(max_num_tokens, dtype=np.int64)
        else:
            self.num_max_token_ = None
        self.fixed_order_ = fixed_order
        self.last_idxs_ = None  # kept for testing / inspection

    def __call__(self, inst, key):
        embs = inst['embeddings']
        crds = inst['coords']
        assert len(embs) == self.n_views_, (
            f"length of embedding is {len(embs)}, n_views is {self.n_views_}")
        lengths = np.array([e.shape[0] for e in embs], dtype=np.int64)

        # Host-side RNG (torch used CPU RNG here too) -> no device sync, and
        # the pallas kernel shapes stay static per view (no recompiles).
        rng = np.random.default_rng(_seed_from_key(key))

        if self.fixed_order_:
            asgmt_ord = np.arange(self.n_views_)
        else:
            asgmt_ord = rng.permutation(self.n_views_)

        r = rng.random(self.n_views_).astype(np.float32)
        sizes = np.rint(
            (r * self.masking_range_[asgmt_ord] + self.masking_min_[asgmt_ord])
            * lengths).astype(np.int64)
        if self.num_max_token_ is not None:
            sizes = np.minimum(sizes, self.num_max_token_)
        sizes = np.minimum(sizes, lengths)   # can't sample more rows than exist

        new_embs, new_crds, idxs = [], [], []
        for i in range(self.n_views_):
            L = int(lengths[i])
            size = int(sizes[i])

            # Static per-view padded gather size, rounded to the dtype-native
            # sublane multiple (8 f32 / 16 bf16 / 32 int8).
            sub = max(_sublane_multiple(embs[i].dtype),
                      _sublane_multiple(crds[i].dtype))
            s_cap = L if self.num_max_token_ is None else min(L, int(self.num_max_token_[i]))
            S_pad = max(sub, _round_up(s_cap, sub))

            # O(size)-ish sampling without replacement (keeps the host off the
            # critical path for large L).
            idx = rng.choice(L, size=size, replace=False).astype(np.int32)
            idx_pad = np.zeros(S_pad, dtype=np.int32)
            idx_pad[:size] = idx
            idxs.append(idx)

            e_o, c_o = gather_rows_fused(embs[i], crds[i], idx_pad)
            # TODO(synk): output length is data-dependent; slice on the host
            # side since TPU kernels require static shapes.
            new_embs.append(e_o[:size])
            new_crds.append(c_o[:size])

        self.last_idxs_ = idxs
        inst['embeddings'] = new_embs
        inst['coords'] = new_crds
        return inst


# --------------------------------- main ------------------------------------ #

if __name__ == "__main__":
    key = jax.random.PRNGKey(0)
    ks = jax.random.split(key, 8)

    # Three views: two small tables (one-hot fallback path) and one larger
    # table with a tiny token cap (exercises the indexed-gather fast path).
    emb0 = jax.random.normal(ks[0], (16, 32), dtype=jnp.float32)
    crd0 = jax.random.normal(ks[1], (16, 4), dtype=jnp.float32)
    emb1 = jax.random.normal(ks[2], (8, 32), dtype=jnp.float32)
    crd1 = jax.random.normal(ks[3], (8, 4), dtype=jnp.float32)
    emb2 = jax.random.normal(ks[4], (512, 32), dtype=jnp.float32)
    crd2 = jax.random.normal(ks[5], (512, 4), dtype=jnp.float32)

    orig_embs = [emb0, emb1, emb2]
    orig_crds = [crd0, crd1, crd2]
    inst = {'embeddings': list(orig_embs), 'coords': list(orig_crds)}

    module = NViewRandomMasking(
        masking_ratio_ranges=[[0.8, 1.0], [0.3, 0.7], [0.05, 0.1]],
        max_num_tokens=[12, 6, 8],
        fixed_order=False,
    )

    out = module(inst, ks[6])

    for arr in out['embeddings'] + out['coords']:
        jax.block_until_ready(arr)

    # sanity: shapes consistent, and gathered rows equal the reference gather
    for i, (e, c) in enumerate(zip(out['embeddings'], out['coords'])):
        idx = module.last_idxs_[i]
        assert e.shape[0] == c.shape[0] == idx.shape[0]
        assert e.shape[1] == orig_embs[i].shape[1]
        assert c.shape[1] == orig_crds[i].shape[1]
        ref_e = np.asarray(orig_embs[i])[idx, :]
        ref_c = np.asarray(orig_crds[i])[idx, :]
        np.testing.assert_allclose(np.asarray(e), ref_e, rtol=0, atol=0)
        np.testing.assert_allclose(np.asarray(c), ref_c, rtol=0, atol=0)

    # Additionally exercise the chunked + ragged one-hot path by forcing a
    # tiny VMEM budget (TL=8, L=20 -> 3 chunks, ragged last chunk).
    embT = jax.random.normal(ks[7], (20, 32), dtype=jnp.float32)
    crdT = jax.random.normal(ks[6], (20, 4), dtype=jnp.float32)
    idxT = np.array([3, 17, 0, 9, 19, 5, 2, 11] + [0] * 8, dtype=np.int32)  # S_pad=16
    eT, cT = gather_rows_fused(embT, crdT, idxT, vmem_budget_bytes=1)
    jax.block_until_ready(eT)
    jax.block_until_ready(cT)
    np.testing.assert_allclose(np.asarray(eT)[:8], np.asarray(embT)[idxT[:8]],
                               rtol=0, atol=0)
    np.testing.assert_allclose(np.asarray(cT)[:8], np.asarray(crdT)[idxT[:8]],
                               rtol=0, atol=0)

    print("KERNEL_OK")
</pallas_src>

<mosaic_0001>
module attributes {stable_mosaic.version = 11 : i64} {
  func.func @kernel(%arg0: i32, %arg1: memref<16x1xi32, #tpu.memory_space<vmem>>, %arg2: memref<16x32xf32, #tpu.memory_space<vmem>>, %arg3: memref<16x4xf32, #tpu.memory_space<vmem>>, %arg4: memref<16x32xf32, #tpu.memory_space<vmem>>, %arg5: memref<16x4xf32, #tpu.memory_space<vmem>>) attributes {dimension_semantics = [#tpu.dimension_semantics<arbitrary>], iteration_bounds = array<i64: 1>, scalar_prefetch = 0 : i64, scratch_operands = 0 : i64, tpu.core_type = #tpu.core_type<tc>, window_params = [{pipeline_mode = #tpu.pipeline_mode<synchronous>, transform_indices = @transform_0, window_bounds = array<i64: 16, 1>}, {transform_indices = @transform_1, window_bounds = array<i64: 16, 32>}, {transform_indices = @transform_2, window_bounds = array<i64: 16, 4>}, {pipeline_mode = #tpu.pipeline_mode<synchronous>, transform_indices = @transform_3, window_bounds = array<i64: 16, 32>}, {pipeline_mode = #tpu.pipeline_mode<synchronous>, transform_indices = @transform_4, window_bounds = array<i64: 16, 4>}]} {
    %c0 = arith.constant 0 : index
    %c0_0 = arith.constant 0 : index
    %0 = vector.load %arg1[%c0, %c0_0] : memref<16x1xi32, #tpu.memory_space<vmem>>, vector<16x1xi32>
    %c16_i32 = arith.constant 16 : i32
    %1 = arith.muli %arg0, %c16_i32 : i32
    %2 = vector.broadcast %1 : i32 to vector<16x1xi32>
    %3 = arith.subi %0, %2 : vector<16x1xi32>
    %4 = tpu.iota {dimensions = array<i32: 1>} : vector<16x16xi32>
    %5 = vector.broadcast %3 : vector<16x1xi32> to vector<16x16xi32>
    %6 = arith.cmpi eq, %5, %4 : vector<16x16xi32>
    %c0_1 = arith.constant 0 : index
    %c0_2 = arith.constant 0 : index
    %7 = vector.load %arg2[%c0_1, %c0_2] : memref<16x32xf32, #tpu.memory_space<vmem>>, vector<16x32xf32>
    %c0_3 = arith.constant 0 : index
    %c0_4 = arith.constant 0 : index
    %8 = vector.load %arg3[%c0_3, %c0_4] : memref<16x4xf32, #tpu.memory_space<vmem>>, vector<16x4xf32>
    %9 = arith.extui %6 : vector<16x16xi1> to vector<16x16xi32>
    %10 = arith.sitofp %9 : vector<16x16xi32> to vector<16x16xf32>
    %cst = arith.constant dense<0.000000e+00> : vector<16x32xf32>
    %11 = tpu.matmul %10, %7, %cst {dimension_numbers = #tpu.dot_dimension_numbers<[1], [0], [0], [1], [0, 0, 1, 1], [], []>} : vector<16x16xf32>, vector<16x32xf32>, vector<16x32xf32> -> vector<16x32xf32>
    %cst_5 = arith.constant dense<0.000000e+00> : vector<16x4xf32>
    %12 = tpu.matmul %10, %8, %cst_5 {dimension_numbers = #tpu.dot_dimension_numbers<[1], [0], [0], [1], [0, 0, 1, 1], [], []>} : vector<16x16xf32>, vector<16x4xf32>, vector<16x4xf32> -> vector<16x4xf32>
    %c0_6 = arith.constant 0 : index
    %c0_7 = arith.constant 0 : index
    %13 = vector.load %arg4[%c0_6, %c0_7] : memref<16x32xf32, #tpu.memory_space<vmem>>, vector<16x32xf32>
    tpu.vector_store %arg4[%c0_6, %c0_7], %11 {strides = array<i32>} : memref<16x32xf32, #tpu.memory_space<vmem>>, vector<16x32xf32>,
    %c0_8 = arith.constant 0 : index
    %c0_9 = arith.constant 0 : index
    %14 = vector.load %arg5[%c0_8, %c0_9] : memref<16x4xf32, #tpu.memory_space<vmem>>, vector<16x4xf32>
    tpu.vector_store %arg5[%c0_8, %c0_9], %12 {strides = array<i32>} : memref<16x4xf32, #tpu.memory_space<vmem>>, vector<16x4xf32>,
    return
  }
  func.func @transform_0(%arg0: i32) -> (i32, i32) {
    %c0_i32 = arith.constant 0 : i32
    %c0_i32_0 = arith.constant 0 : i32
    %c0_i32_1 = arith.constant 0 : i32
    return %c0_i32, %c0_i32_0 : i32, i32
  }
  func.func @transform_1(%arg0: i32) -> (i32, i32) {
    %c0_i32 = arith.constant 0 : i32
    %c0_i32_0 = arith.constant 0 : i32
    return %arg0, %c0_i32 : i32, i32
  }
  func.func @transform_2(%arg0: i32) -> (i32, i32) {
    %c0_i32 = arith.constant 0 : i32
    %c0_i32_0 = arith.constant 0 : i32
    return %arg0, %c0_i32 : i32, i32
  }
  func.func @transform_3(%arg0: i32) -> (i32, i32) {
    %c0_i32 = arith.constant 0 : i32
    %c0_i32_0 = arith.constant 0 : i32
    %c0_i32_1 = arith.constant 0 : i32
    return %c0_i32, %c0_i32_0 : i32, i32
  }
  func.func @transform_4(%arg0: i32) -> (i32, i32) {
    %c0_i32 = arith.constant 0 : i32
    %c0_i32_0 = arith.constant 0 : i32
    %c0_i32_1 = arith.constant 0 : i32
    return %c0_i32, %c0_i32_0 : i32, i32
  }
}

</mosaic_0001>

<llo_original>
// kernel: tpu_custom_call.1
$region0: #{tpu_custom_call.1}
  #allocation0 [shape = 'u32[]', space=smem, size = 0x4, offset = 0x4, fixed_abs, tag = 'smem constant byte address 0x4 - core index']
  #allocation1 [shape = 'u32[144,128]{1,0:T(1,128)}', space=vmem, size = 0x12000, scoped, tag = 'internal scratch']
  %s0 = inlined_call_operand.vmem [shape: s32[16,1], index: 0, kind: input, shape index: {}]
  %s1 = inlined_call_operand.vmem [shape: f32[16,32], index: 1, kind: input, shape index: {}]
  %s2 = inlined_call_operand.vmem [shape: f32[16,4], index: 2, kind: input, shape index: {}]
  %s3 = inlined_call_operand.hbm [shape: f32[16,32], index: 3, kind: output, shape index: {0}]
  %s4 = inlined_call_operand.vmem [shape: f32[16,4], index: 4, kind: output, shape index: {1}]
  %5 = xla_tuple %s3, %s4
  %s6 = sld [smem:[#allocation0]]
  $region30: #{tpu_custom_call.1} parent=0
    _
  %s8 = ssub.s32 1, %s6
  %s9 = scalar_select 0, %s8, %s6
  $region1: #{tpu_custom_call.1} parent=0
    #allocation2 [shape = 'u8[8192]{0}', space=vmem, size = 0x2000, scoped, tag = 'output window, operand 0, single buffered']
    #allocation3 [shape = 's32[1]{0}', space=sflag, size = 0x4, scoped, tag = 'scoped memory for tpu_custom_call.1']
    %10 = vsyncpa [#allocation3], 0
    // Predicated region
    $region2: #{tpu_custom_call.1} parent=1 // pred_check
      _
    $region3: #{tpu_custom_call.1} parent=1 // pred_check_branch
      %12 = sbr.rel (0) target = $region5
    $region4: #{tpu_custom_call.1} parent=1 // pred_region
      _
    $region5: #{tpu_custom_call.1} parent=1 // pred_fallthru
      _
    // Predicated region
    $region6: #{tpu_custom_call.1} parent=1 // pred_check
      _
    $region7: #{tpu_custom_call.1} parent=1 // pred_check_branch
      %14 = sbr.rel (0) target = $region9
    $region8: #{tpu_custom_call.1} parent=1 // pred_region
      _
    $region9: #{tpu_custom_call.1} parent=1 // pred_fallthru
      _
    // Predicated region
    $region10: #{tpu_custom_call.1} parent=1 // pred_check
      _
    $region11: #{tpu_custom_call.1} parent=1 // pred_check_branch
      %16 = sbr.rel (0) target = $region13
    $region12: #{tpu_custom_call.1} parent=1 // pred_region
      _
    $region13: #{tpu_custom_call.1} parent=1 // pred_fallthru
      _
    %v17 = vld [vmem:[%s0] sm:$0xff]
    %v18 = vld [vmem:[%s0 + $0x8] sm:$0xff]
    %s19 = smul.u32 0, 16
    %v20 = vstv %s19
    %v21 = vsub.s32 %v17, %v20
    %v22 = vsub.s32 %v18, %v20
    %v23 = vlaneseq
    %v24 = vand.u32 %v23, 127
    %25 = vset.pattern.permute.xlu0 0
    %26 = vperm.xlu0 %25, %v21
    %v27 = vpop.permute.xlu0 %26
    %28 = vset.pattern.permute.xlu0 0
    %29 = vperm.xlu0 %28, %v22
    %v30 = vpop.permute.xlu0 %29
    %vm31 = vcmp.eq.s32.totalorder %v27, %v24
    %vm32 = vcmp.eq.s32.totalorder %v30, %v24
    %v33 = vld [vmem:[%s1] sm:$0xff]
    %v34 = vld [vmem:[%s1 + $0x8] sm:$0xff]
    %v35 = vld [vmem:[%s2] sm:$0xff]
    %v36 = vld [vmem:[%s2 + $0x8] sm:$0xff]
    %v37 = vsel %vm31, 1, 0
    %v38 = vsel %vm32, 1, 0
    %v39 = vcvt.s32.f32 %v37
    %v40 = vcvt.s32.f32 %v38
    %vm41 = vcmask 130048
    %v43 = vsel %vm41, %v39, 0
    %v46 = vsel %vm41, %v40, 0
    %48 = vmatprep.subr.mxu0 0.0
    %49 = vmatpush1.msra.mxu0 %v33
    %50 = vmatprep.subr.mxu0 0.0
    %51 = vmatpush1.msra.mxu0 %v34
    %52 = vmatprep.subr.mxu0 0.0
    %53 = vmatpush1.msra.mxu0 0.0
    %54 = vmatprep.subr.mxu0 0.0
    %55 = vmatpush1.msra.mxu0 0.0
    %56 = vmatprep.subr.mxu0 0.0
    %57 = vmatpush1.msra.mxu0 0.0
    %58 = vmatprep.subr.mxu0 0.0
    %59 = vmatpush1.msra.mxu0 0.0
    %60 = vmatprep.subr.mxu0 0.0
    %61 = vmatpush1.msra.mxu0 0.0
    %62 = vmatprep.subr.mxu0 0.0
    %63 = vmatpush1.msra.mxu0 0.0
    %64 = vmatprep.subr.mxu0 0.0
    %65 = vmatpush1.msra.mxu0 0.0
    %66 = vmatprep.subr.mxu0 0.0
    %67 = vmatpush1.msra.mxu0 0.0
    %68 = vmatprep.subr.mxu0 0.0
    %69 = vmatpush1.msra.mxu0 0.0
    %70 = vmatprep.subr.mxu0 0.0
    %71 = vmatpush1.msra.mxu0 0.0
    %72 = vmatprep.subr.mxu0 0.0
    %73 = vmatpush1.msra.mxu0 0.0
    %74 = vmatprep.subr.mxu0 0.0
    %75 = vmatpush1.msra.mxu0 0.0
    %76 = vmatprep.subr.mxu0 0.0
    %77 = vmatpush1.msra.mxu0 0.0
    %78 = vmatprep.subr.mxu0 0.0
    %79 = vmatpush1.msra.mxu0 0.0
    %80 = vmatprep.subr.mxu0 0.0
    %81 = vmatpush1.msra.mxu0 0.0
    %82 = vmatprep.subr.mxu0 0.0
    %83 = vmatpush1.msra.mxu0 0.0
    %84 = vmatprep.subr.mxu0 0.0
    %85 = vmatpush1.msra.mxu0 0.0
    %86 = vmatprep.subr.mxu0 0.0
    %87 = vmatpush1.msra.mxu0 0.0
    %88 = vmatprep.subr.mxu0 0.0
    %89 = vmatpush1.msra.mxu0 0.0
    %90 = vmatprep.subr.mxu0 0.0
    %91 = vmatpush1.msra.mxu0 0.0
    %92 = vmatprep.subr.mxu0 0.0
    %93 = vmatpush1.msra.mxu0 0.0
    %94 = vmatprep.subr.mxu0 0.0
    %95 = vmatpush1.msra.mxu0 0.0
    %96 = vmatprep.subr.mxu0 0.0
    %97 = vmatpush1.msra.mxu0 0.0
    %98 = vmatprep.subr.mxu0 0.0
    %99 = vmatpush1.msra.mxu0 0.0
    %100 = vmatprep.subr.mxu0 0.0
    %101 = vmatpush1.msra.mxu0 0.0
    %102 = vmatprep.subr.mxu0 0.0
    %103 = vmatpush1.msra.mxu0 0.0
    %104 = vmatprep.subr.mxu0 0.0
    %105 = vmatpush1.msra.mxu0 0.0
    %106 = vmatprep.subr.mxu0 0.0
    %107 = vmatpush1.msra.mxu0 0.0
    %108 = vmatprep.subr.mxu0 0.0
    %109 = vmatpush1.msra.mxu0 0.0
    %110 = vmatprep.subr.mxu0 0.0
    %111 = vmatpush1.msra.mxu0 0.0
    %112 = vmatprep.mubr.f32.mxu0 0.0
    %113 = vmatmul.mubr.f32.gmra.mrb[0].mxu0 %v43
    %v114 = vpop.f32.mrb[0].mxu0
    %v115 = vadd.f32 0.0, %v114
    %v116 = vpop.f32.mrb[0].mxu0
    %117 = vmatprep.mubr.f32.mxu0 0.0
    %118 = vmatmul.mubr.f32.gmra.mrb[0].mxu0 %v46
    %v119 = vpop.f32.mrb[0].mxu0
    %v120 = vadd.f32 0.0, %v119
    %v121 = vpop.f32.mrb[0].mxu0
    %122 = vdwg.mxu0
    %123 = vmatprep.subr.mxu0 0.0
    %124 = vmatpush1.msra.mxu0 %v35
    %125 = vmatprep.subr.mxu0 0.0
    %126 = vmatpush1.msra.mxu0 %v36
    %127 = vmatprep.subr.mxu0 0.0
    %128 = vmatpush1.msra.mxu0 0.0
    %129 = vmatprep.subr.mxu0 0.0
    %130 = vmatpush1.msra.mxu0 0.0
    %131 = vmatprep.subr.mxu0 0.0
    %132 = vmatpush1.msra.mxu0 0.0
    %133 = vmatprep.subr.mxu0 0.0
    %134 = vmatpush1.msra.mxu0 0.0
    %135 = vmatprep.subr.mxu0 0.0
    %136 = vmatpush1.msra.mxu0 0.0
    %137 = vmatprep.subr.mxu0 0.0
    %138 = vmatpush1.msra.mxu0 0.0
    %139 = vmatprep.subr.mxu0 0.0
    %140 = vmatpush1.msra.mxu0 0.0
    %141 = vmatprep.subr.mxu0 0.0
    %142 = vmatpush1.msra.mxu0 0.0
    %143 = vmatprep.subr.mxu0 0.0
    %144 = vmatpush1.msra.mxu0 0.0
    %145 = vmatprep.subr.mxu0 0.0
    %146 = vmatpush1.msra.mxu0 0.0
    %147 = vmatprep.subr.mxu0 0.0
    %148 = vmatpush1.msra.mxu0 0.0
    %149 = vmatprep.subr.mxu0 0.0
    %150 = vmatpush1.msra.mxu0 0.0
    %151 = vmatprep.subr.mxu0 0.0
    %152 = vmatpush1.msra.mxu0 0.0
    %153 = vmatprep.subr.mxu0 0.0
    %154 = vmatpush1.msra.mxu0 0.0
    %155 = vmatprep.subr.mxu0 0.0
    %156 = vmatpush1.msra.mxu0 0.0
    %157 = vmatprep.subr.mxu0 0.0
    %158 = vmatpush1.msra.mxu0 0.0
    %159 = vmatprep.subr.mxu0 0.0
    %160 = vmatpush1.msra.mxu0 0.0
    %161 = vmatprep.subr.mxu0 0.0
    %162 = vmatpush1.msra.mxu0 0.0
    %163 = vmatprep.subr.mxu0 0.0
    %164 = vmatpush1.msra.mxu0 0.0
    %165 = vmatprep.subr.mxu0 0.0
    %166 = vmatpush1.msra.mxu0 0.0
    %167 = vmatprep.subr.mxu0 0.0
    %168 = vmatpush1.msra.mxu0 0.0
    %169 = vmatprep.subr.mxu0 0.0
    %170 = vmatpush1.msra.mxu0 0.0
    %171 = vmatprep.subr.mxu0 0.0
    %172 = vmatpush1.msra.mxu0 0.0
    %173 = vmatprep.subr.mxu0 0.0
    %174 = vmatpush1.msra.mxu0 0.0
    %175 = vmatprep.subr.mxu0 0.0
    %176 = vmatpush1.msra.mxu0 0.0
    %177 = vmatprep.subr.mxu0 0.0
    %178 = vmatpush1.msra.mxu0 0.0
    %179 = vmatprep.subr.mxu0 0.0
    %180 = vmatpush1.msra.mxu0 0.0
    %181 = vmatprep.subr.mxu0 0.0
    %182 = vmatpush1.msra.mxu0 0.0
    %183 = vmatprep.subr.mxu0 0.0
    %184 = vmatpush1.msra.mxu0 0.0
    %185 = vmatprep.subr.mxu0 0.0
    %186 = vmatpush1.msra.mxu0 0.0
    %187 = vmatprep.mubr.f32.mxu0 0.0
    %188 = vmatmul.mubr.f32.gmra.mrb[0].mxu0 %v43
    %v189 = vpop.f32.mrb[0].mxu0
    %v190 = vadd.f32 0.0, %v189
    %v191 = vpop.f32.mrb[0].mxu0
    %192 = vmatprep.mubr.f32.mxu0 0.0
    %193 = vmatmul.mubr.f32.gmra.mrb[0].mxu0 %v46
    %v194 = vpop.f32.mrb[0].mxu0
    %v195 = vadd.f32 0.0, %v194
    %v196 = vpop.f32.mrb[0].mxu0
    %197 = vdwg.mxu0
    %vm198 = vcmask 261120
    %199 = vst.msk [vmem:[#allocation2] sm:$0xff] %vm198, %v115
    %200 = vst.msk [vmem:[#allocation2 + $0x8] sm:$0xff] %vm198, %v120
    %vm201 = vcmask 31744
    %202 = vst.msk [vmem:[%s4] sm:$0xff] %vm201, %v190
    %203 = vst.msk [vmem:[%s4 + $0x8] sm:$0xff] %vm201, %v195
    // Predicated region
    $region14: #{tpu_custom_call.1} parent=1 // pred_check
      _
    $region15: #{tpu_custom_call.1} parent=1 // pred_check_branch
      %205 = sbr.rel (0) target = $region17
    $region16: #{tpu_custom_call.1} parent=1 // pred_region
      %s207 = ssub.s32 256, 256
      %208 = vsyncadd [#allocation3], %s207
      %s209 = sshll.u32 [#allocation2], 4
      %s210 = int_to_ptr.vmem [resolvable:$true] %s209
      %215 = dma.vmem_to_hbm [thread:$0]  %s210, 256, %s3, [#allocation3], 128, 128, 8
    $region17: #{tpu_custom_call.1} parent=1 // pred_fallthru
      _
    // Predicated region
    $region18: #{tpu_custom_call.1} parent=1 // pred_check
      _
    $region19: #{tpu_custom_call.1} parent=1 // pred_check_branch
      %217 = sbr.rel (0) target = $region21
    $region20: #{tpu_custom_call.1} parent=1 // pred_region
      _
    $region21: #{tpu_custom_call.1} parent=1 // pred_fallthru
      _
    // Predicated region
    $region22: #{tpu_custom_call.1} parent=1 // pred_check
      _
    $region23: #{tpu_custom_call.1} parent=1 // pred_check_branch
      %219 = sbr.rel (0) target = $region25
    $region24: #{tpu_custom_call.1} parent=1 // pred_region
      %220 = dma.done [#allocation3], 256
    $region25: #{tpu_custom_call.1} parent=1 // pred_fallthru
      _
    // Predicated region
    $region26: #{tpu_custom_call.1} parent=1 // pred_check
      _
    $region27: #{tpu_custom_call.1} parent=1 // pred_check_branch
      %222 = sbr.rel (0) target = $region29
    $region28: #{tpu_custom_call.1} parent=1 // pred_region
      _
    $region29: #{tpu_custom_call.1} parent=1 // pred_fallthru
      _
    %223 = vsyncpa [#allocation3], 1

</llo_original>
